<compile_context>
chip_gen: v7x
topology: tpu7x:2x2x1
jax: 0.10.0
libtpu: 0.0.40
codegen_flags: <defaults>
</compile_context>

<pallas_src>
import functools

import jax
import jax.numpy as jnp
from jax.experimental import pallas as pl
from jax.experimental.pallas import tpu as pltpu

LANES = 128
SUBLANES = 8
NSPLIT = 2           # leading "parallel" grid axis: both TCs on v7x, serial 2-loop elsewhere
PAD_LOGIT = -1.0e4   # bce(PAD_LOGIT, 0) == 0.0 exactly in f32


def _cdiv(a, b):
    return (a + b - 1) // b


def _round_up(x, m):
    return ((x + m - 1) // m) * m


def _partial_bce_kernel(pred_ref, targ_ref, out_ref, *, tile_rows, rows_valid, ragged):
    c = pl.program_id(0)   # core-split axis ("parallel")
    i = pl.program_id(1)   # streaming reduction axis ("arbitrary")

    # Zero this core's resident (8, 128) partial-sum block on its first step.
    @pl.when(i == 0)
    def _():
        out_ref[...] = jnp.zeros_like(out_ref)

    # Numerically-stable BCE-with-logits in f32:
    #   bce(x, y) = max(x, 0) - x*y + log1p(exp(-|x|))
    x = pred_ref[...].astype(jnp.float32)
    y = targ_ref[...].astype(jnp.float32)   # targets stream in narrow dtype; cast here
    bce = jnp.maximum(x, 0.0) - x * y + jnp.log1p(jnp.exp(-jnp.abs(x)))

    def accumulate(vals):
        # Per-lane partial sums (sublane reduce); cross-lane/core reduce is deferred
        # to the tiny JAX epilogue. Only row 0 of the (8,128) block is used.
        out_ref[0:1, :] += jnp.sum(vals, axis=0, keepdims=True)

    if not ragged:
        accumulate(bce)
    else:
        # Only tiles overlapping the ragged tail (or the clamped duplicate tile on the
        # second core) pay for the mask; everything else accumulates unmasked.
        tile = c * pl.num_programs(1) + i
        row_start = tile * tile_rows
        needs_mask = row_start + tile_rows > rows_valid

        @pl.when(jnp.logical_not(needs_mask))
        def _():
            accumulate(bce)

        @pl.when(needs_mask)
        def _():
            row_ids = jax.lax.broadcasted_iota(jnp.int32, bce.shape, 0)
            accumulate(jnp.where(row_start + row_ids < rows_valid, bce, 0.0))


def custom_focal_loss(predictions, targets, *, alpha=1.0, gamma=2.0, tile_rows=8192):
    """Scalar float32 focal loss matching the PyTorch CustomLoss module.

    predictions: (N, 1) or (N,) float logits; targets: (N,) labels (any dtype).
    """
    pred_flat = predictions.reshape(-1)
    targ_flat = targets.reshape(-1)
    n = pred_flat.shape[0]
    assert targ_flat.shape[0] == n

    # Pad only to the next multiple of 128 lanes (needed for the lane-dense reshape);
    # pad values make bce exactly 0 so they never need masking. No-op when N % 128 == 0.
    rows = _cdiv(n, LANES)
    n128 = rows * LANES
    if n128 != n:
        pred_flat = jnp.pad(pred_flat, (0, n128 - n), constant_values=PAD_LOGIT)
        targ_flat = jnp.pad(targ_flat, (0, n128 - n), constant_values=0)
    pred2d = pred_flat.reshape(rows, LANES)
    targ2d = targ_flat.reshape(rows, LANES)

    # Per-chip VMEM budget (v5e/v6e: 128 MiB, v7x: 64 MiB per TensorCore), with headroom.
    try:
        vmem_capacity = int(pltpu.get_tpu_info().vmem_capacity_bytes)
    except Exception:
        vmem_capacity = 64 << 20  # conservative fallback (v7x-sized)
    vmem_budget = max(16 << 20, vmem_capacity - (16 << 20))

    # Bound the tile so (2 inputs x 2 pipeline buffers x tile) fits under the budget,
    # and don't use tiles larger than each core's share of the data. Keep % 32 == 0
    # so f32 / bf16 / int8 blocks all stay tile-aligned.
    bytes_per_row = LANES * (pred2d.dtype.itemsize + targ2d.dtype.itemsize)
    vmem_rows_cap = max(32, ((vmem_budget - (8 << 20)) // (2 * bytes_per_row)) // 32 * 32)
    data_rows_cap = _round_up(max(1, _cdiv(rows, NSPLIT)), 32)
    tile_rows = max(32, (min(int(tile_rows), vmem_rows_cap, data_rows_cap) // 32) * 32)

    num_tiles = _cdiv(rows, tile_rows)
    tiles_per_core = _cdiv(num_tiles, NSPLIT)
    ragged = (rows != num_tiles * tile_rows) or (num_tiles != NSPLIT * tiles_per_core)

    # Explicitly above v5e's 16 MiB default scoped limit, clamped under physical VMEM.
    vmem_limit = int(min(vmem_budget, 2 * tile_rows * bytes_per_row + (8 << 20)))

    def in_index_map(c, i):
        # Clamp so the (at most one) grid slot past the real tile count on the second
        # core re-reads the last valid tile; the in-kernel mask zeroes its contribution.
        return (jnp.minimum(c * tiles_per_core + i, num_tiles - 1), 0)

    kernel = functools.partial(
        _partial_bce_kernel, tile_rows=tile_rows, rows_valid=rows, ragged=ragged)

    partials = pl.pallas_call(
        kernel,
        out_shape=jax.ShapeDtypeStruct((NSPLIT * SUBLANES, LANES), jnp.float32),
        grid=(NSPLIT, tiles_per_core),
        in_specs=[
            pl.BlockSpec((tile_rows, LANES), in_index_map),
            pl.BlockSpec((tile_rows, LANES), in_index_map),
        ],
        out_specs=pl.BlockSpec((SUBLANES, LANES), lambda c, i: (c, 0)),
        compiler_params=pltpu.CompilerParams(
            dimension_semantics=("parallel", "arbitrary"),
            vmem_limit_bytes=vmem_limit,
        ),
    )(pred2d, targ2d)

    # Tiny scalar epilogue in plain JAX: cross-core + cross-lane reduce, then the
    # focal transform of the scalar mean BCE (torch.mean of a scalar is the scalar).
    mean_bce = jnp.sum(partials) / jnp.float32(n)
    pt = jnp.exp(-mean_bce)
    one_minus_pt = 1.0 - pt
    g = float(gamma)
    if g == int(g) and 0 <= int(g) <= 8:
        w = jnp.float32(1.0)
        for _ in range(int(g)):
            w = w * one_minus_pt
    else:
        w = one_minus_pt ** jnp.float32(g)
    return jnp.float32(alpha) * w * mean_bce


def _reference_jax(predictions, targets, alpha=1.0, gamma=2.0):
    x = predictions.astype(jnp.float32).reshape(-1, 1)
    y = targets.astype(jnp.float32).reshape(-1, 1)
    bce = jnp.maximum(x, 0.0) - x * y + jnp.log1p(jnp.exp(-jnp.abs(x)))
    m = jnp.mean(bce)
    pt = jnp.exp(-m)
    return alpha * (1.0 - pt) ** gamma * m


if __name__ == "__main__":
    key = jax.random.PRNGKey(0)
    k1, k2, k3, k4, k5, k6 = jax.random.split(key, 6)

    # Case 1: tiny batch, N % 128 == 0, single ragged tile per core.
    N = 256
    p1 = jax.random.normal(k1, (N, 1), dtype=jnp.float32)            # raw logits
    t1 = jax.random.bernoulli(k2, p=0.5, shape=(N,)).astype(jnp.int8)  # 0/1 labels
    loss1 = jax.block_until_ready(custom_focal_loss(p1, t1, alpha=1.0, gamma=2.0))
    ref1 = _reference_jax(p1, t1)
    assert jnp.allclose(loss1, ref1, rtol=1e-5, atol=1e-6), (loss1, ref1)

    # Case 2: N not a multiple of 128 -> small 128-pad + masked ragged last block.
    M = 5000
    p2 = jax.random.normal(k3, (M, 1), dtype=jnp.float32)
    t2 = jax.random.bernoulli(k4, p=0.3, shape=(M,)).astype(jnp.int8)
    loss2 = jax.block_until_ready(custom_focal_loss(p2, t2))
    ref2 = _reference_jax(p2, t2)
    assert jnp.allclose(loss2, ref2, rtol=1e-5, atol=1e-6), (loss2, ref2)

    # Case 3: exact tile multiple -> static unmasked path, float targets.
    P = 128 * 64
    p3 = jax.random.normal(k5, (P, 1), dtype=jnp.float32)
    t3 = jax.random.bernoulli(k6, p=0.5, shape=(P,)).astype(jnp.float32)
    loss3 = jax.block_until_ready(custom_focal_loss(p3, t3))
    ref3 = _reference_jax(p3, t3)
    assert jnp.allclose(loss3, ref3, rtol=1e-5, atol=1e-6), (loss3, ref3)

    print("KERNEL_OK")
</pallas_src>

<mosaic_0001>
module attributes {stable_mosaic.version = 11 : i64} {
  func.func @_partial_bce_kernel(%arg0: i32, %arg1: i32, %arg2: memref<32x128xf32, #tpu.memory_space<vmem>>, %arg3: memref<32x128xi8, #tpu.memory_space<vmem>>, %arg4: memref<8x128xf32, #tpu.memory_space<vmem>>) attributes {dimension_semantics = [#tpu.dimension_semantics<parallel>, #tpu.dimension_semantics<arbitrary>], iteration_bounds = array<i64: 2, 1>, scalar_prefetch = 0 : i64, scratch_operands = 0 : i64, tpu.core_type = #tpu.core_type<tc>, window_params = [{transform_indices = @transform_0, window_bounds = array<i64: 32, 128>}, {transform_indices = @transform_1, window_bounds = array<i64: 32, 128>}, {transform_indices = @transform_2, window_bounds = array<i64: 8, 128>}]} {
    %c0_i32 = arith.constant 0 : i32
    %0 = arith.cmpi eq, %arg1, %c0_i32 : i32
    %1 = arith.extui %0 : i1 to i32
    %c0_i32_0 = arith.constant 0 : i32
    %2 = arith.cmpi ne, %1, %c0_i32_0 : i32
    scf.if %2 {
      %cst_8 = arith.constant 0.000000e+00 : f32
      %26 = vector.broadcast %cst_8 : f32 to vector<8x128xf32>
      %c0_9 = arith.constant 0 : index
      %c0_10 = arith.constant 0 : index
      %27 = vector.load %arg4[%c0_9, %c0_10] : memref<8x128xf32, #tpu.memory_space<vmem>>, vector<8x128xf32>
      tpu.vector_store %arg4[%c0_9, %c0_10], %26 {strides = array<i32>} : memref<8x128xf32, #tpu.memory_space<vmem>>, vector<8x128xf32>,
    } else {
    }
    %c0 = arith.constant 0 : index
    %c0_1 = arith.constant 0 : index
    %3 = vector.load %arg2[%c0, %c0_1] : memref<32x128xf32, #tpu.memory_space<vmem>>, vector<32x128xf32>
    %c0_2 = arith.constant 0 : index
    %c0_3 = arith.constant 0 : index
    %4 = vector.load %arg3[%c0_2, %c0_3] : memref<32x128xi8, #tpu.memory_space<vmem>>, vector<32x128xi8>
    %5 = arith.sitofp %4 : vector<32x128xi8> to vector<32x128xf32>
    %cst = arith.constant 0.000000e+00 : f32
    %6 = vector.broadcast %cst : f32 to vector<32x128xf32>
    %7 = arith.maximumf %3, %6 : vector<32x128xf32>
    %8 = arith.mulf %3, %5 : vector<32x128xf32>
    %9 = arith.subf %7, %8 : vector<32x128xf32>
    %10 = math.absf %3 : vector<32x128xf32>
    %cst_4 = arith.constant 0.000000e+00 : f32
    %11 = vector.broadcast %cst_4 : f32 to vector<32x128xf32>
    %12 = arith.subf %11, %10 : vector<32x128xf32>
    %13 = math.exp %12 : vector<32x128xf32>
    %14 = math.log1p %13 : vector<32x128xf32>
    %15 = arith.addf %9, %14 : vector<32x128xf32>
    %c1_i32 = arith.constant 1 : i32
    %16 = arith.muli %arg0, %c1_i32 : i32
    %17 = arith.addi %16, %arg1 : i32
    %c32_i32 = arith.constant 32 : i32
    %18 = arith.muli %17, %c32_i32 : i32
    %c32_i32_5 = arith.constant 32 : i32
    %19 = arith.addi %18, %c32_i32_5 : i32
    %c2_i32 = arith.constant 2 : i32
    %20 = arith.cmpi sgt, %19, %c2_i32 : i32
    %true = arith.constant true
    %21 = arith.xori %20, %true : i1
    %22 = arith.extui %21 : i1 to i32
    %c0_i32_6 = arith.constant 0 : i32
    %23 = arith.cmpi ne, %22, %c0_i32_6 : i32
    scf.if %23 {
      %c0_8 = arith.constant 0 : index
      %c0_9 = arith.constant 0 : index
      %26 = vector.load %arg4[%c0_8, %c0_9] : memref<8x128xf32, #tpu.memory_space<vmem>>, vector<1x128xf32>
      %cst_10 = arith.constant dense<0.000000e+00> : vector<128xf32>
      %27 = vector.multi_reduction <add>, %15, %cst_10 [0] : vector<32x128xf32> to vector<128xf32>
      %28 = vector.shape_cast %27 : vector<128xf32> to vector<1x128xf32>
      %29 = arith.addf %26, %28 : vector<1x128xf32>
      %c0_11 = arith.constant 0 : index
      %c0_12 = arith.constant 0 : index
      %30 = vector.load %arg4[%c0_11, %c0_12] : memref<8x128xf32, #tpu.memory_space<vmem>>, vector<1x128xf32>
      tpu.vector_store %arg4[%c0_11, %c0_12], %29 {strides = array<i32>} : memref<8x128xf32, #tpu.memory_space<vmem>>, vector<1x128xf32>,
    } else {
    }
    %24 = arith.extui %20 : i1 to i32
    %c0_i32_7 = arith.constant 0 : i32
    %25 = arith.cmpi ne, %24, %c0_i32_7 : i32
    scf.if %25 {
      %26 = tpu.iota {dimensions = array<i32: 0>} : vector<32x128xi32>
      %27 = vector.broadcast %18 : i32 to vector<32x128xi32>
      %28 = arith.addi %27, %26 : vector<32x128xi32>
      %c2_i32_8 = arith.constant 2 : i32
      %29 = vector.broadcast %c2_i32_8 : i32 to vector<32x128xi32>
      %30 = arith.cmpi slt, %28, %29 : vector<32x128xi32>
      %cst_9 = arith.constant 0.000000e+00 : f32
      %31 = vector.broadcast %cst_9 : f32 to vector<32x128xf32>
      %32 = arith.select %30, %15, %31 : vector<32x128xi1>, vector<32x128xf32>
      %c0_10 = arith.constant 0 : index
      %c0_11 = arith.constant 0 : index
      %33 = vector.load %arg4[%c0_10, %c0_11] : memref<8x128xf32, #tpu.memory_space<vmem>>, vector<1x128xf32>
      %cst_12 = arith.constant dense<0.000000e+00> : vector<128xf32>
      %34 = vector.multi_reduction <add>, %32, %cst_12 [0] : vector<32x128xf32> to vector<128xf32>
      %35 = vector.shape_cast %34 : vector<128xf32> to vector<1x128xf32>
      %36 = arith.addf %33, %35 : vector<1x128xf32>
      %c0_13 = arith.constant 0 : index
      %c0_14 = arith.constant 0 : index
      %37 = vector.load %arg4[%c0_13, %c0_14] : memref<8x128xf32, #tpu.memory_space<vmem>>, vector<1x128xf32>
      tpu.vector_store %arg4[%c0_13, %c0_14], %36 {strides = array<i32>} : memref<8x128xf32, #tpu.memory_space<vmem>>, vector<1x128xf32>,
    } else {
    }
    return
  }
  func.func @transform_0(%arg0: i32, %arg1: i32) -> (i32, i32) {
    %c1_i32 = arith.constant 1 : i32
    %0 = arith.muli %arg0, %c1_i32 : i32
    %1 = arith.addi %0, %arg1 : i32
    %c0_i32 = arith.constant 0 : i32
    %2 = arith.minsi %1, %c0_i32 : i32
    %c0_i32_0 = arith.constant 0 : i32
    %c0_i32_1 = arith.constant 0 : i32
    return %2, %c0_i32_0 : i32, i32
  }
  func.func @transform_1(%arg0: i32, %arg1: i32) -> (i32, i32) {
    %c1_i32 = arith.constant 1 : i32
    %0 = arith.muli %arg0, %c1_i32 : i32
    %1 = arith.addi %0, %arg1 : i32
    %c0_i32 = arith.constant 0 : i32
    %2 = arith.minsi %1, %c0_i32 : i32
    %c0_i32_0 = arith.constant 0 : i32
    %c0_i32_1 = arith.constant 0 : i32
    return %2, %c0_i32_0 : i32, i32
  }
  func.func @transform_2(%arg0: i32, %arg1: i32) -> (i32, i32) {
    %c0_i32 = arith.constant 0 : i32
    %c0_i32_0 = arith.constant 0 : i32
    return %arg0, %c0_i32 : i32, i32
  }
}

</mosaic_0001>

<llo_original>
// kernel: tpu_custom_call.1
$region0: #{tpu_custom_call.1}
  #allocation0 [shape = 'u32[]', space=smem, size = 0x4, offset = 0x4, fixed_abs, tag = 'smem constant byte address 0x4 - core index']
  #allocation1 [shape = 'u32[144,128]{1,0:T(1,128)}', space=vmem, size = 0x12000, scoped, tag = 'internal scratch']
  %s0 = inlined_call_operand.hbm [shape: f32[2,128], index: 0, kind: input, shape index: {}]
  %s1 = inlined_call_operand.vmem [shape: s8[2,128], index: 1, kind: input, shape index: {}]
  %s2 = inlined_call_operand.hbm [shape: f32[16,128], index: 2, kind: output, shape index: {}]
  %s3 = sld [smem:[#allocation0]]
  $region57: #{tpu_custom_call.1} parent=0
    _
  %s5 = ssub.s32 1, %s3
  %s6 = scalar_select 0, %s5, %s3
  $region1: #{tpu_custom_call.1} parent=0
    #allocation2 [shape = 'u8[32768]{0}', space=vmem, size = 0x8000, scoped, tag = 'input window, operand 0']
    #allocation3 [shape = 's32[2]{0}', space=sflag, size = 0x8, scoped, tag = 'scoped memory for tpu_custom_call.1']
    #allocation4 [shape = 's32[2]{0}', space=sflag, size = 0x8, scoped, tag = 'scoped memory for tpu_custom_call.1']
    #allocation5 [shape = 'u8[8192]{0}', space=vmem, size = 0x2000, scoped, tag = 'output window, operand 0']
    %7 = vsyncpa [#allocation3], 0
    %s8 = scalar_lea.sflag [#allocation3], 1
    %9 = vsyncpa %s8, 0
    %10 = vsyncpa [#allocation4], 0
    %s11 = scalar_lea.sflag [#allocation4], 1
    %12 = vsyncpa %s11, 0
    loop: start=0, step=1, limit=4
    $region2: #{tpu_custom_call.1} parent=1 // loop_pre_header
      _
    $region3: #{tpu_custom_call.1} parent=1 // loop_header
      %s14 = sphi 0, %s18
      %p15 = scmp.ge.s32.totalorder %s14, 4
      %s21 = sphi 0, %s33
      %s22 = sphi 0, %s29
      %s23 = sphi 0, %s21
      %s24 = sphi 0, %s22
      %s25 = sphi 0, %s23
      %s26 = sphi 0, %s24
      %s42 = sphi 0, %s44
      %s45 = sphi 0, %s42
      %s46 = sphi 0, %s45
      %s62 = sphi 0, %s46
      %s74 = sphi 0, %s76
      %s77 = sphi 0, %s74
      %s78 = sphi 0, %s77
      %s94 = sphi 0, %s78
      %s100 = sphi 0, %s102
      %s103 = sphi 0, %s100
      %s104 = sphi 0, %s103
      %s120 = sphi 0, %s104
    $region4: #{tpu_custom_call.1} parent=1 // loop_header_branch
      %17 = sbr.rel (%p15) target = $region8
    $region5: #{tpu_custom_call.1} parent=1 // loop_body
      %s19 = ssub.s32 %s14, 1
      %s20 = ssub.s32 %s14, 2
      %s27 = sadd.s32 1, %s22
      %p28 = scmp.ge.s32.totalorder %s27, 1
      %s29 = scalar_select %p28, 0, %s27
      %s30 = sadd.s32 1, %s21
      %s31 = scalar_select %p28, %s30, %s21
      %p32 = scmp.ge.s32.totalorder %s31, 2
      %s33 = scalar_select %p32, 0, %s31
      %s34 = sadd.s32 %s21, %s22
      %p35 = scmp.lt.s32.totalorder %s34, 0
      %s36 = scalar_select %p35, %s34, 0
      %s37 = sadd.s32 %s33, %s29
      %p38 = scmp.lt.s32.totalorder %s37, 0
      %s39 = scalar_select %p38, %s37, 0
      %s40 = ssub.s32 %s36, %s39
      %p41 = scmp.eq.s32.totalorder %s40, 0
      %s43 = sadd.s32 %s42, 1
      %s44 = scalar_select %p41, %s42, %s43
      %p47 = pneg %p41
      %p48 = scmp.eq.s32.totalorder %s14, 1
      %p49 = por %p47, %p48
      %p50 = scmp.ne.s32.totalorder %s42, %s45
      %p51 = scmp.eq.s32.totalorder %s14, 0
      %p52 = por %p50, %p51
      %p53 = scmp.ne.s32.totalorder %s42, %s45
      %p54 = scmp.eq.s32.totalorder %s19, 1
      %p55 = por %p53, %p54
      %p56 = scmp.ne.s32.totalorder %s45, %s46
      %p57 = scmp.eq.s32.totalorder %s19, 0
      %p58 = por %p56, %p57
      %p59 = scmp.ne.s32.totalorder %s45, %s46
      %p60 = scmp.eq.s32.totalorder %s20, 1
      %p61 = por %p59, %p60
      %p63 = scmp.ne.s32.totalorder %s46, %s62
      %p64 = scmp.eq.s32.totalorder %s20, 0
      %p65 = por %p63, %p64
      %s66 = sadd.s32 %s21, %s22
      %p67 = scmp.lt.s32.totalorder %s66, 0
      %s68 = scalar_select %p67, %s66, 0
      %s69 = sadd.s32 %s33, %s29
      %p70 = scmp.lt.s32.totalorder %s69, 0
      %s71 = scalar_select %p70, %s69, 0
      %s72 = ssub.s32 %s68, %s71
      %p73 = scmp.eq.s32.totalorder %s72, 0
      %s75 = sadd.s32 %s74, 1
      %s76 = scalar_select %p73, %s74, %s75
      %p79 = pneg %p73
      %p80 = scmp.eq.s32.totalorder %s14, 1
      %p81 = por %p79, %p80
      %p82 = scmp.ne.s32.totalorder %s74, %s77
      %p83 = scmp.eq.s32.totalorder %s14, 0
      %p84 = por %p82, %p83
      %p85 = scmp.ne.s32.totalorder %s74, %s77
      %p86 = scmp.eq.s32.totalorder %s19, 1
      %p87 = por %p85, %p86
      %p88 = scmp.ne.s32.totalorder %s77, %s78
      %p89 = scmp.eq.s32.totalorder %s19, 0
      %p90 = por %p88, %p89
      %p91 = scmp.ne.s32.totalorder %s77, %s78
      %p92 = scmp.eq.s32.totalorder %s20, 1
      %p93 = por %p91, %p92
      %p95 = scmp.ne.s32.totalorder %s78, %s94
      %p96 = scmp.eq.s32.totalorder %s20, 0
      %p97 = por %p95, %p96
      %s98 = ssub.s32 %s21, %s33
      %p99 = scmp.eq.s32.totalorder %s98, 0
      %s101 = sadd.s32 %s100, 1
      %s102 = scalar_select %p99, %s100, %s101
      %p105 = pneg %p99
      %p106 = scmp.eq.s32.totalorder %s14, 1
      %p107 = por %p105, %p106
      %p108 = scmp.ne.s32.totalorder %s100, %s103
      %p109 = scmp.eq.s32.totalorder %s14, 0
      %p110 = por %p108, %p109
      %p111 = scmp.ne.s32.totalorder %s100, %s103
      %p112 = scmp.eq.s32.totalorder %s19, 1
      %p113 = por %p111, %p112
      %p114 = scmp.ne.s32.totalorder %s103, %s104
      %p115 = scmp.eq.s32.totalorder %s19, 0
      %p116 = por %p114, %p115
      %p117 = scmp.ne.s32.totalorder %s103, %s104
      %p118 = scmp.eq.s32.totalorder %s20, 1
      %p119 = por %p117, %p118
      %p121 = scmp.ne.s32.totalorder %s104, %s120
      %p122 = scmp.eq.s32.totalorder %s20, 0
      %p123 = por %p121, %p122
      %p124 = scmp.le.s32.totalorder 1, %s14
      %p125 = scmp.lt.s32.totalorder %s14, 3
      %p126 = pnand %p124, %p125
      %p127 = pneg %p126
      // Predicated region
      $region9: #{tpu_custom_call.1} parent=5 // pred_check
        _
      $region10: #{tpu_custom_call.1} parent=5 // pred_check_branch
        %129 = sbr.rel (%p126) target = $region12
      $region11: #{tpu_custom_call.1} parent=5 // pred_region
        %s130 = ssub.s32 %s14, 1
      $region12: #{tpu_custom_call.1} parent=5 // pred_fallthru
        _
      %p131 = scmp.lt.s32.totalorder %s14, 2
      // Predicated region
      $region13: #{tpu_custom_call.1} parent=5 // pred_check
        %p132 = pneg %p131
      $region14: #{tpu_custom_call.1} parent=5 // pred_check_branch
        %134 = sbr.rel (%p132) target = $region16
      $region15: #{tpu_custom_call.1} parent=5 // pred_region
        // Predicated region
        $region17: #{tpu_custom_call.1} parent=15 // pred_check
          %p135 = pneg %p52
        $region18: #{tpu_custom_call.1} parent=15 // pred_check_branch
          %137 = sbr.rel (%p135) target = $region20
        $region19: #{tpu_custom_call.1} parent=15 // pred_region
          %s138 = sand.u32 %s42, 1
          %s139 = scalar_lea.sflag [#allocation3], %s138
          %s140 = sand.u32 %s42, 1
          %s141 = smul.addr %s140, 32
          %s142 = scalar_lea.vmem [#allocation2], %s141
          %s143 = sadd.s32 %s21, %s22
          %p144 = scmp.lt.s32.totalorder %s143, 0
          %s145 = scalar_select %p144, %s143, 0
          %s146 = smul.u32 16, %s145
          %s147 = ssub.s32 1, %s146
          %s148 = smul.u32 32, %s147
          %s150 = ssub.s32 512, %s148
          %151 = vsyncadd %s139, %s150
          %p152 = scmp.ne.s32.totalorder 0, %s148
          %s153 = smul.addr %s146, 32
          %s154 = scalar_lea.hbm %s0, %s153
          %s155 = smul.u32 2, %s147
          %s156 = sshll.u32 %s142, 4
          %s157 = int_to_ptr.vmem [resolvable:$true] %s156
          %s158 = sshll.u32 %s155, 4
          %162 = dma.hbm_to_vmem [thread:$0]  (%p152), %s154, %s158, %s157, %s139, 32, 32, 2
        $region20: #{tpu_custom_call.1} parent=15 // pred_fallthru
          _
        // Predicated region
        $region21: #{tpu_custom_call.1} parent=15 // pred_check
          %p163 = pneg %p84
        $region22: #{tpu_custom_call.1} parent=15 // pred_check_branch
          %165 = sbr.rel (%p163) target = $region24
        $region23: #{tpu_custom_call.1} parent=15 // pred_region
          %s166 = sadd.s32 %s21, %s22
          %p167 = scmp.lt.s32.totalorder %s166, 0
          %s168 = scalar_select %p167, %s166, 0
          %s169 = smul.u32 8, %s168
          %s170 = ssub.s32 1, %s169
          %s171 = smul.u32 16, %s170
          %p172 = scmp.lt.s32.totalorder %s169, 0
          %s173 = scalar_select %p172, %s169, 0
          %s174 = scalar_lea.vmem %s1, %s173
          %s175 = sadd.s32 %s21, %s22
          %p176 = scmp.lt.s32.totalorder %s175, 0
          %s177 = scalar_select %p176, %s175, 0
          %s178 = smul.u32 8, %s177
          %s179 = ssub.s32 1, %s178
          %s180 = smul.u32 16, %s179
        $region24: #{tpu_custom_call.1} parent=15 // pred_fallthru
          _
      $region16: #{tpu_custom_call.1} parent=5 // pred_fallthru
        _
      %p181 = scmp.le.s32.totalorder 1, %s14
      %p182 = scmp.lt.s32.totalorder %s14, 3
      %p183 = pnand %p181, %p182
      %p184 = pneg %p183
      // Predicated region
      $region25: #{tpu_custom_call.1} parent=5 // pred_check
        _
      $region26: #{tpu_custom_call.1} parent=5 // pred_check_branch
        %186 = sbr.rel (%p183) target = $region28
      $region27: #{tpu_custom_call.1} parent=5 // pred_region
        %s187 = ssub.s32 %s14, 1
        %s188 = sand.u32 %s45, 1
        %s189 = scalar_lea.sflag [#allocation3], %s188
        %s190 = sand.u32 %s45, 1
        %s191 = smul.addr %s190, 32
        %s192 = scalar_lea.vmem [#allocation2], %s191
        // Predicated region
        $region29: #{tpu_custom_call.1} parent=27 // pred_check
          %p193 = pneg %p58
        $region30: #{tpu_custom_call.1} parent=27 // pred_check_branch
          %195 = sbr.rel (%p193) target = $region32
        $region31: #{tpu_custom_call.1} parent=27 // pred_region
          %196 = dma.done %s189, 512
        $region32: #{tpu_custom_call.1} parent=27 // pred_fallthru
          _
        %s197 = sand.u32 %s45, 1
        %s198 = scalar_lea.sflag [#allocation3], %s197
        %s199 = sand.u32 %s45, 1
        %s200 = smul.addr %s199, 32
        %s201 = scalar_lea.vmem [#allocation2], %s200
        %p202 = pneg %p58
        %p203 = pneg %p55
        %s204 = sadd.s32 %s23, %s24
        %p205 = scmp.lt.s32.totalorder %s204, 0
        %s206 = scalar_select %p205, %s204, 0
        %s207 = smul.u32 8, %s206
        %s208 = ssub.s32 1, %s207
        %s209 = smul.u32 16, %s208
        %p210 = scmp.lt.s32.totalorder %s207, 0
        %s211 = scalar_select %p210, %s207, 0
        %s212 = scalar_lea.vmem %s1, %s211
        %p213 = pneg %p90
        %p214 = pneg %p87
        %p215 = pneg %p116
        %p216 = pneg %p113
        %s217 = sand.u32 %s103, 1
        %s218 = scalar_lea.sflag [#allocation4], %s217
        %s219 = sand.u32 %s103, 1
        %s220 = smul.addr %s219, 8
        %s221 = scalar_lea.vmem [#allocation5], %s220
        %s222 = sadd.s32 %s23, %s24
        %p223 = scmp.lt.s32.totalorder %s222, 0
        %s224 = scalar_select %p223, %s222, 0
        %s225 = smul.u32 16, %s224
        %s226 = ssub.s32 1, %s225
        %s227 = smul.u32 32, %s226
        %s228 = sadd.s32 %s23, %s24
        %p229 = scmp.lt.s32.totalorder %s228, 0
        %s230 = scalar_select %p229, %s228, 0
        %s231 = smul.u32 8, %s230
        %s232 = ssub.s32 1, %s231
        %s233 = smul.u32 16, %s232
        %p234 = scmp.lt.s32.totalorder %s231, 0
        %s235 = scalar_select %p234, %s231, 0
        %s236 = scalar_lea.vmem %s1, %s235
        %s237 = sadd.s32 %s23, %s24
        %p238 = scmp.lt.s32.totalorder %s237, 0
        %s239 = scalar_select %p238, %s237, 0
        %s240 = smul.u32 8, %s239
        %s241 = ssub.s32 1, %s240
        %s242 = smul.u32 16, %s241
        %p243 = scmp.eq.s32.totalorder %s24, 0
        // Predicated region
        $region33: #{tpu_custom_call.1} parent=27 // pred_check
          %p244 = pneg %p243
        $region34: #{tpu_custom_call.1} parent=27 // pred_check_branch
          %246 = sbr.rel (%p244) target = $region36
        $region35: #{tpu_custom_call.1} parent=27 // pred_region
          %247 = vst [vmem:[%s221] sm:$0xff] 0.0
        $region36: #{tpu_custom_call.1} parent=27 // pred_fallthru
          _
        %v248 = vld [vmem:[%s192] sm:$0xff]
        %v249 = vld [vmem:[%s192 + $0x8] sm:$0xff]
        %v250 = vld [vmem:[%s192 + $0x10] sm:$0xff]
        %v251 = vld [vmem:[%s192 + $0x18] sm:$0xff]
        %v252 = vld [vmem:[%s236] sm:$0x1]
        %v253 = vld [vmem:[%s236 + $0x1] sm:$0x1]
        %v254 = vld [vmem:[%s236 + $0x2] sm:$0x1]
        %v255 = vld [vmem:[%s236 + $0x3] sm:$0x1]
        %v256 = vld [vmem:[%s236 + $0x4] sm:$0x1]
        %v257 = vld [vmem:[%s236 + $0x5] sm:$0x1]
        %v258 = vld [vmem:[%s236 + $0x6] sm:$0x1]
        %v259 = vld [vmem:[%s236 + $0x7] sm:$0x1]
        %v260 = vunpack.c.0.s8 %v252
        %v261 = vunpack.c.0.s8 %v253
        %v262 = vunpack.c.0.s8 %v254
        %v263 = vunpack.c.0.s8 %v255
        %v264 = vunpack.c.0.s8 %v256
        %v265 = vunpack.c.0.s8 %v257
        %v266 = vunpack.c.0.s8 %v258
        %v267 = vunpack.c.0.s8 %v259
        %v268 = vcvt.s32.f32 %v260
        %v269 = vcvt.s32.f32 %v261
        %v270 = vcvt.s32.f32 %v262
        %v271 = vcvt.s32.f32 %v263
        %v272 = vcvt.s32.f32 %v264
        %v273 = vcvt.s32.f32 %v265
        %v274 = vcvt.s32.f32 %v266
        %v275 = vcvt.s32.f32 %v267
        %v276 = vmax.f32 %v248, 0.0
        %v277 = vmax.f32 %v249, 0.0
        %v278 = vmax.f32 %v250, 0.0
        %v279 = vmax.f32 %v251, 0.0
        %v288 = vcombine.low %v268, %v269
        %v289 = vcombine.low %v270, %v271
        %v290 = vcombine.low %v272, %v273
        %v291 = vcombine.low %v274, %v275
        %v296 = vmul.f32 %v248, %v288
        %v297 = vmul.f32 %v249, %v289
        %v298 = vmul.f32 %v250, %v290
        %v299 = vmul.f32 %v251, %v291
        %v300 = vsub.f32 %v276, %v296
        %v301 = vsub.f32 %v277, %v297
        %v302 = vsub.f32 %v278, %v298
        %v303 = vsub.f32 %v279, %v299
        %v304 = vand.u32 2147483647, %v248
        %v305 = vand.u32 2147483647, %v249
        %v306 = vand.u32 2147483647, %v250
        %v307 = vand.u32 2147483647, %v251
        %v308 = vsub.f32 0.0, %v304
        %v309 = vsub.f32 0.0, %v305
        %v310 = vsub.f32 0.0, %v306
        %v311 = vsub.f32 0.0, %v307
        %v312 = vmul.f32 %v308, 1.442695
        %v313 = vpow.pop %v312
        %v314 = vmul.f32 %v309, 1.442695
        %v315 = vpow.pop %v314
        %v316 = vmul.f32 %v310, 1.442695
        %v317 = vpow.pop %v316
        %v318 = vmul.f32 %v311, 1.442695
        %v319 = vpow.pop %v318
        %v320 = vadd.f32 %v313, 1.0
        %v321 = vlog2.pop %v320
        %v322 = vmul.f32 %v321, 0.6931472
        %v323 = vmul.f32 -0.5, %v313
        %v324 = vadd.f32 %v323, 1.0
        %v325 = vmul.f32 %v324, %v313
        %v326 = vand.u32 2147483647, %v313
        %vm327 = vcmp.lt.f32.partialorder %v326, 0.0004427343
        %v328 = vsel %vm327, %v325, %v322
        %v329 = vadd.f32 %v315, 1.0
        %v330 = vlog2.pop %v329
        %v331 = vmul.f32 %v330, 0.6931472
        %v332 = vmul.f32 -0.5, %v315
        %v333 = vadd.f32 %v332, 1.0
        %v334 = vmul.f32 %v333, %v315
        %v335 = vand.u32 2147483647, %v315
        %vm336 = vcmp.lt.f32.partialorder %v335, 0.0004427343
        %v337 = vsel %vm336, %v334, %v331
        %v338 = vadd.f32 %v317, 1.0
        %v339 = vlog2.pop %v338
        %v340 = vmul.f32 %v339, 0.6931472
        %v341 = vmul.f32 -0.5, %v317
        %v342 = vadd.f32 %v341, 1.0
        %v343 = vmul.f32 %v342, %v317
        %v344 = vand.u32 2147483647, %v317
        %vm345 = vcmp.lt.f32.partialorder %v344, 0.0004427343
        %v346 = vsel %vm345, %v343, %v340
        %v347 = vadd.f32 %v319, 1.0
        %v348 = vlog2.pop %v347
        %v349 = vmul.f32 %v348, 0.6931472
        %v350 = vmul.f32 -0.5, %v319
        %v351 = vadd.f32 %v350, 1.0
        %v352 = vmul.f32 %v351, %v319
        %v353 = vand.u32 2147483647, %v319
        %vm354 = vcmp.lt.f32.partialorder %v353, 0.0004427343
        %v355 = vsel %vm354, %v352, %v349
        %v356 = vadd.f32 %v300, %v328
        %v357 = vadd.f32 %v301, %v337
        %v358 = vadd.f32 %v302, %v346
        %v359 = vadd.f32 %v303, %v355
        %s360 = sadd.s32 %s23, %s24
        %s361 = smul.u32 %s360, 32
        %s362 = sadd.s32 %s361, 32
        %p363 = scmp.gt.s32.totalorder %s362, 2
        %p364 = scmp.le.s32.totalorder %s362, 2
        // Predicated region
        $region37: #{tpu_custom_call.1} parent=27 // pred_check
          %p365 = pneg %p364
        $region38: #{tpu_custom_call.1} parent=27 // pred_check_branch
          %367 = sbr.rel (%p365) target = $region40
        $region39: #{tpu_custom_call.1} parent=27 // pred_region
          %v368 = vld [vmem:[%s221] sm:$0x1]
          %v369 = vadd.f32 %v356, %v357
          %v370 = vadd.f32 %v369, %v358
          %v371 = vadd.f32 %v370, %v359
          %v372 = vrot.slane %v371, 4
          %v373 = vadd.f32 %v371, %v372
          %v374 = vrot.slane %v373, 2
          %v375 = vadd.f32 %v373, %v374
          %v376 = vrot.slane %v375, 1
          %v377 = vadd.f32 %v375, %v376
          %v378 = vadd.f32 %v368, %v377
          %379 = vst [vmem:[%s221] sm:$0x1] %v378
        $region40: #{tpu_custom_call.1} parent=27 // pred_fallthru
          _
        // Predicated region
        $region41: #{tpu_custom_call.1} parent=27 // pred_check
          %p380 = pneg %p363
        $region42: #{tpu_custom_call.1} parent=27 // pred_check_branch
          %382 = sbr.rel (%p380) target = $region44
        $region43: #{tpu_custom_call.1} parent=27 // pred_region
          %v383 = vlaneseq
          %v384 = vshrl.u32 %v383, 7
          %v385 = vadd.s32 %v384, 8
          %v386 = vadd.s32 %v384, 16
          %v387 = vadd.s32 %v384, 24
          %v388 = vstv %s361
          %v389 = vadd.s32 %v388, %v384
          %v390 = vadd.s32 %v388, %v385
          %v391 = vadd.s32 %v388, %v386
          %v392 = vadd.s32 %v388, %v387
          %vm393 = vcmp.lt.s32.totalorder %v389, 2
          %vm394 = vcmp.lt.s32.totalorder %v390, 2
          %vm395 = vcmp.lt.s32.totalorder %v391, 2
          %vm396 = vcmp.lt.s32.totalorder %v392, 2
          %v397 = vsel %vm393, %v356, 0.0
          %v398 = vsel %vm394, %v357, 0.0
          %v399 = vsel %vm395, %v358, 0.0
          %v400 = vsel %vm396, %v359, 0.0
          %v401 = vld [vmem:[%s221] sm:$0x1]
          %v402 = vadd.f32 %v397, %v398
          %v403 = vadd.f32 %v402, %v399
          %v404 = vadd.f32 %v403, %v400
          %v405 = vrot.slane %v404, 4
          %v406 = vadd.f32 %v404, %v405
          %v407 = vrot.slane %v406, 2
          %v408 = vadd.f32 %v406, %v407
          %v409 = vrot.slane %v408, 1
          %v410 = vadd.f32 %v408, %v409
          %v411 = vadd.f32 %v401, %v410
          %412 = vst [vmem:[%s221] sm:$0x1] %v411
        $region44: #{tpu_custom_call.1} parent=27 // pred_fallthru
          _
        %s413 = sand.u32 %s103, 1
        %s414 = scalar_lea.sflag [#allocation4], %s413
        %s415 = sand.u32 %s103, 1
        %s416 = smul.addr %s415, 8
        %s417 = scalar_lea.vmem [#allocation5], %s416
        // Predicated region
        $region45: #{tpu_custom_call.1} parent=27 // pred_check
          %p418 = pneg %p113
        $region46: #{tpu_custom_call.1} parent=27 // pred_check_branch
          %420 = sbr.rel (%p418) target = $region48
        $region47: #{tpu_custom_call.1} parent=27 // pred_region
          %s422 = ssub.s32 128, 128
          %423 = vsyncadd %s414, %s422
          %s424 = smul.addr %s23, 128
          %s425 = scalar_lea.hbm %s2, %s424
          %s427 = sshll.u32 %s417, 4
          %s428 = int_to_ptr.vmem [resolvable:$true] %s427
          %430 = dma.vmem_to_hbm [thread:$0]  %s428, 128, %s425, %s414
        $region48: #{tpu_custom_call.1} parent=27 // pred_fallthru
          _
      $region28: #{tpu_custom_call.1} parent=5 // pred_fallthru
        _
      %p431 = scmp.le.s32.totalorder 2, %s14
      // Predicated region
      $region49: #{tpu_custom_call.1} parent=5 // pred_check
        %p432 = pneg %p431
      $region50: #{tpu_custom_call.1} parent=5 // pred_check_branch
        %434 = sbr.rel (%p432) target = $region52
      $region51: #{tpu_custom_call.1} parent=5 // pred_region
        %s435 = ssub.s32 %s14, 2
        // Predicated region
        $region53: #{tpu_custom_call.1} parent=51 // pred_check
          %p436 = pneg %p119
        $region54: #{tpu_custom_call.1} parent=51 // pred_check_branch
          %438 = sbr.rel (%p436) target = $region56
        $region55: #{tpu_custom_call.1} parent=51 // pred_region
          %s439 = sand.u32 %s104, 1
          %s440 = scalar_lea.sflag [#allocation4], %s439
          %s441 = sand.u32 %s104, 1
          %s442 = smul.addr %s441, 8
          %s443 = scalar_lea.vmem [#allocation5], %s442
          %444 = dma.done %s440, 128
        $region56: #{tpu_custom_call.1} parent=51 // pred_fallthru
          _
      $region52: #{tpu_custom_call.1} parent=5 // pred_fallthru
        _
    $region6: #{tpu_custom_call.1} parent=1 // loop_footer
      %s18 = sadd.s32 1, %s14
    $region7: #{tpu_custom_call.1} parent=1 // loop_footer_branch
      %13 = sbr.rel target = $region3
    $region8: #{tpu_custom_call.1} parent=1 // loop_exit
      _
    %445 = vsyncpa [#allocation3], 1
    %s446 = scalar_lea.sflag [#allocation3], 1
    %447 = vsyncpa %s446, 1
    %448 = vsyncpa [#allocation4], 1
    %s449 = scalar_lea.sflag [#allocation4], 1
    %450 = vsyncpa %s449, 1

</llo_original>
